<compile_context>
chip_gen: v6e
topology: v6e:2x2x1
jax: 0.10.0
libtpu: 0.0.40
codegen_flags: <defaults>
</compile_context>

<pallas_src>
import functools

import jax
import jax.numpy as jnp
from jax.experimental import pallas as pl
from jax.experimental.pallas import tpu as pltpu


# ---------------------------------------------------------------------------
# Per-generation VMEM budgets
# ---------------------------------------------------------------------------
def _vmem_budgets():
    """(vmem_limit_bytes, block_budget_bytes) derived from the chip's VMEM.

    v5e/v6e: 128 MiB VMEM -> limit 96 MiB, block budget 48 MiB.
    v7x:      64 MiB VMEM -> limit 48 MiB, block budget 24 MiB.
    """
    try:
        vmem = int(pltpu.get_tpu_info().vmem_capacity_bytes)
    except Exception:
        vmem = 64 * 1024 * 1024            # conservative (v7x-sized) fallback
    return (3 * vmem) // 4, (3 * vmem) // 8


# ---------------------------------------------------------------------------
# Kernels
# ---------------------------------------------------------------------------
def _upsample_flat_kernel(x_ref, p_ref, o_ref):
    # x_ref: (bm, H*W); p_ref: (H*W, s^2*H*W) VMEM-resident 0/1; o_ref: (bm, s^2*H*W)
    y = jnp.dot(x_ref[...], p_ref[...], preferred_element_type=jnp.float32)
    o_ref[...] = y.astype(o_ref.dtype)


def _upsample_2d_kernel(x_ref, r_ref, o_ref, *, s):
    # x_ref: (bm, W); r_ref: (W, s*W) VMEM-resident 0/1; o_ref: (s*bm, s*W)
    # Column (lane) replication on the MXU: contraction depth is only W.
    xr = jnp.dot(x_ref[...], r_ref[...], preferred_element_type=jnp.float32)
    # Row (sublane) replication via jnp.repeat: zero MXU FLOPs.  (The previous
    # version used a dense (s*bm, bm) left matmul here -- depth bm, MXU-bound.)
    o_ref[...] = jnp.repeat(xr.astype(o_ref.dtype), s, axis=0)


# ---------------------------------------------------------------------------
# Constant 0/1 replication matrices (built once in the wrapper and kept
# VMEM-resident across the sequential grid via a constant index_map).
# ---------------------------------------------------------------------------
def _flat_replication_matrix(H, W, s, dtype):
    """(H*W, (s*H)*(s*W)) 0/1 matrix P with out_flat = x_flat @ P (nearest)."""
    k = jnp.arange((s * H) * (s * W))
    i, j = k // (s * W), k % (s * W)
    src = (i // s) * W + (j // s)                     # source flat index per out col
    return (jnp.arange(H * W)[:, None] == src[None, :]).astype(dtype)


def _col_replication_matrix(W, s, dtype):
    """(W, s*W) 0/1 matrix replicating each column s times."""
    j = jnp.arange(s * W)
    return (jnp.arange(W)[:, None] == (j // s)[None, :]).astype(dtype)


# ---------------------------------------------------------------------------
# Block sizing
# ---------------------------------------------------------------------------
def _pick_row_block(rows, unit, footprint_bytes, budget):
    """Largest multiple of `unit` dividing `rows` that fits `budget`.

    Prefers an even grid with >= 4 steps (>= 2 per TensorCore on v7x's
    megacore), then any grid with >= 2 steps, then the largest fitting block."""
    cands = [c for c in range(unit, min(rows, 8192) + 1, unit) if rows % c == 0]
    if not cands:
        return rows                                   # full-extent block (always legal)
    fit = [c for c in cands if footprint_bytes(c) <= budget] or [cands[0]]
    even4 = [c for c in fit if rows // c >= 4 and (rows // c) % 2 == 0]
    multi = [c for c in fit if rows // c >= 2]
    pool = even4 or multi or fit
    return max(pool)


# ---------------------------------------------------------------------------
# Public wrapper: equivalent of nn.functional.interpolate(x, scale_factor)
# (mode='nearest', NCHW, integer scale_factor)
# ---------------------------------------------------------------------------
def upsample_nearest(x: jax.Array, scale_factor: int = 2) -> jax.Array:
    if int(scale_factor) != scale_factor or scale_factor < 1:
        # TODO(synk): F.interpolate also accepts fractional scale_factor / size=.
        raise NotImplementedError("only positive integer scale_factor is supported")
    s = int(scale_factor)
    N, C, H, W = x.shape
    sH, sW = s * H, s * W

    if s == 1:
        return x
    if not jnp.issubdtype(x.dtype, jnp.floating):
        # TODO(synk): integer inputs need a bit-exact copy path (strided stores);
        # the 0/1-matmul route goes through the f32 MXU (exact only for |x| < 2^24).
        return jnp.repeat(jnp.repeat(x, s, axis=2), s, axis=3)

    cdtype = x.dtype                                   # keep payload in native float dtype
    item = jnp.dtype(cdtype).itemsize
    vmem_limit, block_budget = _vmem_budgets()
    unit = 8 * max(1, 4 // item)                       # sublane unit: 8 f32, 16 bf16/f16

    K, Ko = H * W, sH * sW
    # The flat single-matmul path stays HBM-bound only while its contraction
    # depth K is below the per-dtype roofline crossover (v5e/v7x worst case).
    k_max = 128 if item >= 4 else 512

    # TODO(synk): matmul-based replication propagates NaN/Inf across its whole
    # contraction (0 * NaN = NaN), unlike true nearest-neighbor.

    if K <= k_max:
        # ---- small-spatial path: flatten H*W onto lanes, single matmul ------
        rows = N * C
        x2 = x.reshape(rows, K)
        P = _flat_replication_matrix(H, W, s, cdtype)

        def footprint(bm):
            blocks = 2 * bm * (K + Ko) * item          # double-buffered in/out blocks
            consts = 2 * K * Ko * item                 # P is double-buffered too
            interm = bm * Ko * 4                       # f32 matmul result
            return blocks + consts + interm

        bm = _pick_row_block(rows, unit, footprint, block_budget)

        cost = pl.CostEstimate(
            flops=2 * rows * K * Ko, transcendentals=0,
            bytes_accessed=int((1 + s * s) * x.size * item + K * Ko * item))

        out2 = pl.pallas_call(
            _upsample_flat_kernel,
            out_shape=jax.ShapeDtypeStruct((rows, Ko), x.dtype),
            grid=(rows // bm,),
            in_specs=[
                pl.BlockSpec((bm, K), lambda i: (i, 0)),
                pl.BlockSpec((K, Ko), lambda i: (0, 0)),   # VMEM-resident constant
            ],
            out_specs=pl.BlockSpec((bm, Ko), lambda i: (i, 0)),
            compiler_params=pltpu.CompilerParams(
                dimension_semantics=("parallel",),
                vmem_limit_bytes=vmem_limit,
            ),
            cost_estimate=cost,
        )(x2, P)
        return out2.reshape(N, C, sH, sW)

    # ---- general path: (N*C*H, W) rows; column matmul + sublane row repeat --
    # TODO(synk): for very large W (>~256 f32) the W-deep column contraction
    # itself nears the roofline; column-tile W with a block-diagonal R then.
    rows = N * C * H
    x2 = x.reshape(rows, W)
    R = _col_replication_matrix(W, s, cdtype)

    def footprint(bm):
        blocks = 2 * bm * (W + s * sW) * item          # double-buffered in/out blocks
        consts = 2 * W * sW * item                     # R is double-buffered too
        interm = bm * sW * 4 + s * bm * sW * item      # f32 matmul result + repeat temp
        return blocks + consts + interm

    bm = _pick_row_block(rows, unit, footprint, block_budget)

    cost = pl.CostEstimate(
        flops=2 * rows * W * sW, transcendentals=0,
        bytes_accessed=int((1 + s * s) * x.size * item + W * sW * item))

    out2 = pl.pallas_call(
        functools.partial(_upsample_2d_kernel, s=s),
        out_shape=jax.ShapeDtypeStruct((s * rows, sW), x.dtype),
        grid=(rows // bm,),
        in_specs=[
            pl.BlockSpec((bm, W), lambda i: (i, 0)),
            pl.BlockSpec((W, sW), lambda i: (0, 0)),       # VMEM-resident constant
        ],
        out_specs=pl.BlockSpec((s * bm, sW), lambda i: (i, 0)),
        compiler_params=pltpu.CompilerParams(
            dimension_semantics=("parallel",),
            vmem_limit_bytes=vmem_limit,
        ),
        cost_estimate=cost,
    )(x2, R)
    return out2.reshape(N, C, sH, sW)


if __name__ == "__main__":
    key = jax.random.PRNGKey(0)
    k1, k2, k3, k4 = jax.random.split(key, 4)

    def ref_upsample(x, s):
        return jnp.repeat(jnp.repeat(x, s, axis=2), s, axis=3)

    # 1) ACGAN-style tiny spatial, f32: flat single-matmul path (K = 64).
    x = jax.random.normal(k1, (2, 4, 8, 8), dtype=jnp.float32)
    out = jax.block_until_ready(upsample_nearest(x, 2))
    assert out.shape == (2, 4, 16, 16) and out.dtype == x.dtype
    assert jnp.array_equal(out, ref_upsample(x, 2)), "mismatch (flat f32 path)"

    # 2) 16x16 f32: K = 256 > 128 -> separable path (col matmul + row repeat).
    x = jax.random.normal(k2, (2, 4, 16, 16), dtype=jnp.float32)
    out = jax.block_until_ready(upsample_nearest(x, 2))
    assert out.shape == (2, 4, 32, 32) and out.dtype == x.dtype
    assert jnp.array_equal(out, ref_upsample(x, 2)), "mismatch (2D f32 path)"

    # 3) 16x16 bf16: K = 256 <= 512 -> flat path in bf16.
    xb = jax.random.normal(k3, (2, 4, 16, 16)).astype(jnp.bfloat16)
    outb = jax.block_until_ready(upsample_nearest(xb, 2))
    assert outb.shape == (2, 4, 32, 32) and outb.dtype == xb.dtype
    assert jnp.array_equal(outb, ref_upsample(xb, 2)), "mismatch (flat bf16 path)"

    # 4) Larger spatial bf16: separable path with lane-dense (sW = 128) output.
    xc = jax.random.normal(k4, (1, 2, 64, 64)).astype(jnp.bfloat16)
    outc = jax.block_until_ready(upsample_nearest(xc, 2))
    assert outc.shape == (1, 2, 128, 128) and outc.dtype == xc.dtype
    assert jnp.array_equal(outc, ref_upsample(xc, 2)), "mismatch (2D bf16 path)"

    # 5) scale_factor = 3, f32 (flat path, non-default scale).
    xd = jax.random.normal(k1, (2, 3, 8, 8), dtype=jnp.float32)
    outd = jax.block_until_ready(upsample_nearest(xd, 3))
    assert outd.shape == (2, 3, 24, 24) and outd.dtype == xd.dtype
    assert jnp.array_equal(outd, ref_upsample(xd, 3)), "mismatch (scale=3)"

    print("KERNEL_OK")
</pallas_src>

<mosaic_0001>
module attributes {stable_mosaic.version = 11 : i64} {
  func.func @_upsample_flat_kernel(%arg0: i32, %arg1: memref<8x64xf32, #tpu.memory_space<vmem>>, %arg2: memref<64x256xf32, #tpu.memory_space<vmem>>, %arg3: memref<8x256xf32, #tpu.memory_space<vmem>>) attributes {dimension_semantics = [#tpu.dimension_semantics<parallel>], iteration_bounds = array<i64: 1>, scalar_prefetch = 0 : i64, scratch_operands = 0 : i64, tpu.core_type = #tpu.core_type<tc>, window_params = [{transform_indices = @transform_0, window_bounds = array<i64: 8, 64>}, {pipeline_mode = #tpu.pipeline_mode<synchronous>, transform_indices = @transform_1, window_bounds = array<i64: 64, 256>}, {transform_indices = @transform_2, window_bounds = array<i64: 8, 256>}]} {
    %c0 = arith.constant 0 : index
    %c0_0 = arith.constant 0 : index
    %0 = vector.load %arg1[%c0, %c0_0] : memref<8x64xf32, #tpu.memory_space<vmem>>, vector<8x64xf32>
    %c0_1 = arith.constant 0 : index
    %c0_2 = arith.constant 0 : index
    %1 = vector.load %arg2[%c0_1, %c0_2] : memref<64x256xf32, #tpu.memory_space<vmem>>, vector<64x256xf32>
    %cst = arith.constant dense<0.000000e+00> : vector<8x256xf32>
    %2 = tpu.matmul %0, %1, %cst {dimension_numbers = #tpu.dot_dimension_numbers<[1], [0], [0], [1], [0, 0, 1, 1], [], []>} : vector<8x64xf32>, vector<64x256xf32>, vector<8x256xf32> -> vector<8x256xf32>
    %c0_3 = arith.constant 0 : index
    %c0_4 = arith.constant 0 : index
    %3 = vector.load %arg3[%c0_3, %c0_4] : memref<8x256xf32, #tpu.memory_space<vmem>>, vector<8x256xf32>
    tpu.vector_store %arg3[%c0_3, %c0_4], %2 {strides = array<i32>} : memref<8x256xf32, #tpu.memory_space<vmem>>, vector<8x256xf32>,
    return
  }
  func.func @transform_0(%arg0: i32) -> (i32, i32) {
    %c0_i32 = arith.constant 0 : i32
    %c0_i32_0 = arith.constant 0 : i32
    return %arg0, %c0_i32 : i32, i32
  }
  func.func @transform_1(%arg0: i32) -> (i32, i32) {
    %c0_i32 = arith.constant 0 : i32
    %c0_i32_0 = arith.constant 0 : i32
    %c0_i32_1 = arith.constant 0 : i32
    return %c0_i32, %c0_i32_0 : i32, i32
  }
  func.func @transform_2(%arg0: i32) -> (i32, i32) {
    %c0_i32 = arith.constant 0 : i32
    %c0_i32_0 = arith.constant 0 : i32
    return %arg0, %c0_i32 : i32, i32
  }
}

</mosaic_0001>

<llo_original>
// kernel: tpu_custom_call.1
$region0: #{tpu_custom_call.1}
  #allocation0 [shape = 'u32[]', space=smem, size = 0x4, offset = 0x4, fixed_abs, tag = 'smem constant byte address 0x4 - core index']
  #allocation1 [shape = 'u32[144,128]{1,0:T(1,128)}', space=vmem, size = 0x12000, scoped, tag = 'internal scratch']
  %s0 = inlined_call_operand.hbm [shape: f32[8,64], index: 0, kind: input, shape index: {}]
  %s1 = inlined_call_operand.hbm [shape: f32[64,256], index: 1, kind: input, shape index: {}]
  %s2 = inlined_call_operand.hbm [shape: f32[8,256], index: 2, kind: output, shape index: {}]
  %s3 = sld [smem:[#allocation0]]
  $region26: #{tpu_custom_call.1} parent=0
    _
  %s5 = ssub.s32 1, %s3
  %s6 = scalar_select 0, %s5, %s3
  $region1: #{tpu_custom_call.1} parent=0
    #allocation2 [shape = 'u8[4096]{0}', space=vmem, size = 0x1000, scoped, tag = 'input window, operand 0, single buffered']
    #allocation3 [shape = 's32[1]{0}', space=sflag, size = 0x4, scoped, tag = 'scoped memory for tpu_custom_call.1']
    #allocation4 [shape = 's32[1]{0}', space=sflag, size = 0x4, scoped, tag = 'scoped memory for tpu_custom_call.1']
    #allocation5 [shape = 'u8[65536]{0}', space=vmem, size = 0x10000, scoped, tag = 'input window, operand 1, single buffered']
    #allocation6 [shape = 's32[1]{0}', space=sflag, size = 0x4, scoped, tag = 'scoped memory for tpu_custom_call.1']
    #allocation7 [shape = 'u8[8192]{0}', space=vmem, size = 0x2000, scoped, tag = 'output window, operand 0, single buffered']
    %7 = vsyncpa [#allocation3], 0
    %8 = vsyncpa [#allocation6], 0
    %9 = vsyncpa [#allocation4], 0
    // Predicated region
    $region2: #{tpu_custom_call.1} parent=1 // pred_check
      _
    $region3: #{tpu_custom_call.1} parent=1 // pred_check_branch
      %11 = sbr.rel (0) target = $region5
    $region4: #{tpu_custom_call.1} parent=1 // pred_region
      %s13 = ssub.s32 128, 128
      %14 = vsyncadd [#allocation3], %s13
      %s16 = sshll.u32 [#allocation2], 4
      %s17 = int_to_ptr.vmem [resolvable:$true] %s16
      %19 = dma.hbm_to_vmem [thread:$0]  %s0, 128, %s17, [#allocation3]
    $region5: #{tpu_custom_call.1} parent=1 // pred_fallthru
      _
    // Predicated region
    $region6: #{tpu_custom_call.1} parent=1 // pred_check
      _
    $region7: #{tpu_custom_call.1} parent=1 // pred_check_branch
      %21 = sbr.rel (0) target = $region9
    $region8: #{tpu_custom_call.1} parent=1 // pred_region
      %s23 = ssub.s32 2048, 2048
      %24 = vsyncadd [#allocation6], %s23
      %s25 = sshll.u32 [#allocation5], 4
      %s26 = int_to_ptr.vmem [resolvable:$true] %s25
      %31 = dma.hbm_to_vmem [thread:$0]  %s1, 2048, %s26, [#allocation6], 256, 256, 16
    $region9: #{tpu_custom_call.1} parent=1 // pred_fallthru
      _
    // Predicated region
    $region10: #{tpu_custom_call.1} parent=1 // pred_check
      _
    $region11: #{tpu_custom_call.1} parent=1 // pred_check_branch
      %33 = sbr.rel (0) target = $region13
    $region12: #{tpu_custom_call.1} parent=1 // pred_region
      %34 = dma.done [#allocation3], 128
    $region13: #{tpu_custom_call.1} parent=1 // pred_fallthru
      _
    // Predicated region
    $region14: #{tpu_custom_call.1} parent=1 // pred_check
      _
    $region15: #{tpu_custom_call.1} parent=1 // pred_check_branch
      %36 = sbr.rel (0) target = $region17
    $region16: #{tpu_custom_call.1} parent=1 // pred_region
      %37 = dma.done [#allocation6], 2048
    $region17: #{tpu_custom_call.1} parent=1 // pred_fallthru
      _
    %v38 = vld [vmem:[#allocation2] sm:$0xff]
    %v39 = vld [vmem:[#allocation5] sm:$0xff]
    %v40 = vld [vmem:[#allocation5 + $0x8] sm:$0xff]
    %v41 = vld [vmem:[#allocation5 + $0x10] sm:$0xff]
    %v42 = vld [vmem:[#allocation5 + $0x18] sm:$0xff]
    %v43 = vld [vmem:[#allocation5 + $0x20] sm:$0xff]
    %v44 = vld [vmem:[#allocation5 + $0x28] sm:$0xff]
    %v45 = vld [vmem:[#allocation5 + $0x30] sm:$0xff]
    %v46 = vld [vmem:[#allocation5 + $0x38] sm:$0xff]
    %v47 = vld [vmem:[#allocation5 + $0x40] sm:$0xff]
    %v48 = vld [vmem:[#allocation5 + $0x48] sm:$0xff]
    %v49 = vld [vmem:[#allocation5 + $0x50] sm:$0xff]
    %v50 = vld [vmem:[#allocation5 + $0x58] sm:$0xff]
    %v51 = vld [vmem:[#allocation5 + $0x60] sm:$0xff]
    %v52 = vld [vmem:[#allocation5 + $0x68] sm:$0xff]
    %v53 = vld [vmem:[#allocation5 + $0x70] sm:$0xff]
    %v54 = vld [vmem:[#allocation5 + $0x78] sm:$0xff]
    %vm55 = vcmask 523264
    %v57 = vsel %vm55, %v38, 0
    %59 = vmatprep.subr.mxu0 0.0
    %60 = vmatpush1.msra.mxu0 0.0
    %61 = vmatprep.subr.mxu0 0.0
    %62 = vmatpush1.msra.mxu0 0.0
    %63 = vmatprep.subr.mxu0 0.0
    %64 = vmatpush1.msra.mxu0 0.0
    %65 = vmatprep.subr.mxu0 0.0
    %66 = vmatpush1.msra.mxu0 0.0
    %67 = vmatprep.subr.mxu0 0.0
    %68 = vmatpush1.msra.mxu0 0.0
    %69 = vmatprep.subr.mxu0 0.0
    %70 = vmatpush1.msra.mxu0 0.0
    %71 = vmatprep.subr.mxu0 0.0
    %72 = vmatpush1.msra.mxu0 0.0
    %73 = vmatprep.subr.mxu0 0.0
    %74 = vmatpush1.msra.mxu0 0.0
    %75 = vmatprep.subr.mxu0 %v54
    %76 = vmatpush1.msra.mxu0 %v53
    %77 = vmatprep.subr.mxu0 %v52
    %78 = vmatpush1.msra.mxu0 %v51
    %79 = vmatprep.subr.mxu0 %v50
    %80 = vmatpush1.msra.mxu0 %v49
    %81 = vmatprep.subr.mxu0 %v48
    %82 = vmatpush1.msra.mxu0 %v47
    %83 = vmatprep.subr.mxu0 %v46
    %84 = vmatpush1.msra.mxu0 %v45
    %85 = vmatprep.subr.mxu0 %v44
    %86 = vmatpush1.msra.mxu0 %v43
    %87 = vmatprep.subr.mxu0 %v42
    %88 = vmatpush1.msra.mxu0 %v41
    %89 = vmatprep.subr.mxu0 %v40
    %90 = vmatpush1.msra.mxu0 %v39
    %91 = vmatprep.subr.mxu0 0.0
    %92 = vmatpush2.msra.mxu0 0.0
    %93 = vmatprep.subr.mxu0 0.0
    %94 = vmatpush2.msra.mxu0 0.0
    %95 = vmatprep.subr.mxu0 0.0
    %96 = vmatpush2.msra.mxu0 0.0
    %97 = vmatprep.subr.mxu0 0.0
    %98 = vmatpush2.msra.mxu0 0.0
    %99 = vmatprep.subr.mxu0 0.0
    %100 = vmatpush2.msra.mxu0 0.0
    %101 = vmatprep.subr.mxu0 0.0
    %102 = vmatpush2.msra.mxu0 0.0
    %103 = vmatprep.subr.mxu0 0.0
    %104 = vmatpush2.msra.mxu0 0.0
    %105 = vmatprep.subr.mxu0 0.0
    %106 = vmatpush2.msra.mxu0 0.0
    %107 = vmatprep.subr.mxu0 0.0
    %108 = vmatpush2.msra.mxu0 0.0
    %109 = vmatprep.subr.mxu0 0.0
    %110 = vmatpush2.msra.mxu0 0.0
    %111 = vmatprep.subr.mxu0 0.0
    %112 = vmatpush2.msra.mxu0 0.0
    %113 = vmatprep.subr.mxu0 0.0
    %114 = vmatpush2.msra.mxu0 0.0
    %115 = vmatprep.subr.mxu0 0.0
    %116 = vmatpush2.msra.mxu0 0.0
    %117 = vmatprep.subr.mxu0 0.0
    %118 = vmatpush2.msra.mxu0 0.0
    %119 = vmatprep.subr.mxu0 0.0
    %120 = vmatpush2.msra.mxu0 0.0
    %121 = vmatprep.subr.mxu0 0.0
    %122 = vmatpush2.msra.mxu0 0.0
    %123 = vmatprep.mubr.f32.mxu0 0.0
    %124 = vmatmul.mubr.f32.gmra.mxu0 %v57
    %v125 = vpop.f32.mrf.mxu0
    %v126 = vadd.f32 0.0, %v125
    %v127 = vpop.f32.mrf.mxu0
    %v128 = vadd.f32 0.0, %v127
    %129 = vdwg.mxu0
    %130 = vst [vmem:[#allocation7] sm:$0xff] %v126
    %131 = vst [vmem:[#allocation7 + $0x8] sm:$0xff] %v128
    // Predicated region
    $region18: #{tpu_custom_call.1} parent=1 // pred_check
      _
    $region19: #{tpu_custom_call.1} parent=1 // pred_check_branch
      %133 = sbr.rel (0) target = $region21
    $region20: #{tpu_custom_call.1} parent=1 // pred_region
      %s135 = ssub.s32 256, 256
      %136 = vsyncadd [#allocation4], %s135
      %s138 = sshll.u32 [#allocation7], 4
      %s139 = int_to_ptr.vmem [resolvable:$true] %s138
      %141 = dma.vmem_to_hbm [thread:$0]  %s139, 256, %s2, [#allocation4]
    $region21: #{tpu_custom_call.1} parent=1 // pred_fallthru
      _
    // Predicated region
    $region22: #{tpu_custom_call.1} parent=1 // pred_check
      _
    $region23: #{tpu_custom_call.1} parent=1 // pred_check_branch
      %143 = sbr.rel (0) target = $region25
    $region24: #{tpu_custom_call.1} parent=1 // pred_region
      %144 = dma.done [#allocation4], 256
    $region25: #{tpu_custom_call.1} parent=1 // pred_fallthru
      _
    %145 = vsyncpa [#allocation3], 1
    %146 = vsyncpa [#allocation6], 1
    %147 = vsyncpa [#allocation4], 1

</llo_original>
